<compile_context>
chip_gen: v7x
topology: tpu7x:2x2x1
jax: 0.10.0
libtpu: 0.0.40
codegen_flags: <defaults>
</compile_context>

<pallas_src>
import functools

import jax
import jax.numpy as jnp
from jax.experimental import pallas as pl
from jax.experimental.pallas import tpu as pltpu


def _round_up(n, m):
    return ((n + m - 1) // m) * m


def _residual_block_kernel(x_ref, w1_ref, b1_ref, w2_ref, b2_ref, o_ref):
    """One batch tile: out = x + Linear2(LeakyReLU(Linear1(x))).

    x_ref:  (TB, Dp) f32
    w1_ref/w2_ref: (Dp, Dp) bf16, pre-transposed to (in, out) layout
    b1_ref/b2_ref: (1, Dp) f32
    o_ref: (TB, Dp) x.dtype
    """
    # Linear 1: canonical (M,K)@(K,N) contraction on the MXU, f32 accumulate.
    h = jnp.dot(
        x_ref[...].astype(jnp.bfloat16), w1_ref[...],
        preferred_element_type=jnp.float32,
    ) + b1_ref[...]

    # LeakyReLU, default negative_slope = 0.01 (matches nn.LeakyReLU()).
    h = jnp.where(h > 0, h, 0.01 * h)

    # Linear 2.
    y = jnp.dot(
        h.astype(jnp.bfloat16), w2_ref[...],
        preferred_element_type=jnp.float32,
    ) + b2_ref[...]

    # Residual: re-read the (VMEM-resident) input block here instead of
    # keeping an f32 copy live across both matmuls.
    o_ref[...] = (x_ref[...] + y).astype(o_ref.dtype)


@functools.partial(jax.jit, static_argnames=("block_b",))
def residual_block(x, w1, b1, w2, b2, *, block_b=512):
    """x: (B, D); w1, w2: (D, D) in PyTorch (out, in) layout; b1, b2: (D,)."""
    B, D = x.shape

    # ---- lane-dense / sublane-aligned padded shapes -------------------------
    Dp = _round_up(max(D, 128), 128)          # feature dim -> multiple of 128
    B8 = _round_up(max(B, 8), 8)              # sublane alignment
    TB = min(block_b, B8)                     # batch tile (multiple of 8)
    # Prefer >= 2 grid steps so v7x can shard the parallel axis over its 2 TCs.
    if B8 // TB < 2 and B8 >= 16:
        TB = max(8, (B8 // 2) // 8 * 8)
    Bp = _round_up(B8, TB)

    # ---- one-time wrapper-side weight prep (transpose to (in, out), pad) ----
    # Zero padding keeps the math exact: padded K rows of W1^T multiply padded
    # (zero) x lanes; padded N cols of W1^T + zero bias pad -> hidden pad = 0;
    # LeakyReLU(0)=0; padded K rows of W2^T are zero, so no contamination.
    w1_t = w1.T
    w2_t = w2.T
    if Dp != D:
        w1_t = jnp.pad(w1_t, ((0, Dp - D), (0, Dp - D)))
        w2_t = jnp.pad(w2_t, ((0, Dp - D), (0, Dp - D)))
        b1_p = jnp.pad(b1, (0, Dp - D))
        b2_p = jnp.pad(b2, (0, Dp - D))
    else:
        b1_p, b2_p = b1, b2
    w1_t = w1_t.astype(jnp.bfloat16)
    w2_t = w2_t.astype(jnp.bfloat16)
    b1_p = b1_p.reshape(1, Dp).astype(jnp.float32)
    b2_p = b2_p.reshape(1, Dp).astype(jnp.float32)

    # Skip the extra HBM pad/slice passes entirely when already aligned.
    padded = (Bp != B) or (Dp != D)
    x_p = jnp.pad(x, ((0, Bp - B), (0, Dp - D))) if padded else x

    grid = (Bp // TB,)

    x_spec = pl.BlockSpec((TB, Dp), lambda i: (i, 0))
    # Resident across the grid (constant index_map) -> single-buffer them so
    # weight VMEM is 2*Dp^2*2B, not 4*Dp^2*2B.
    w_spec = pl.BlockSpec((Dp, Dp), lambda i: (0, 0), pipeline_mode=pl.Buffered(1))
    b_spec = pl.BlockSpec((1, Dp), lambda i: (0, 0), pipeline_mode=pl.Buffered(1))
    o_spec = pl.BlockSpec((TB, Dp), lambda i: (i, 0))

    # ---- explicit VMEM budget (don't rely on the 16/32 MiB scoped default) --
    weight_bytes = 2 * Dp * Dp * 2            # two bf16 weights, single-buffered
    bias_bytes = 2 * 2 * Dp * 4               # biases (tiny)
    io_bytes = 2 * 2 * TB * Dp * 4            # double-buffered x and out tiles
    interm_bytes = 4 * TB * Dp * 4            # h, y, casts
    vmem_limit = int(1.25 * (weight_bytes + bias_bytes + io_bytes + interm_bytes))
    vmem_limit = max(vmem_limit + (4 << 20), 32 << 20)
    vmem_limit = min(vmem_limit, 128 << 20)

    itemsize = x.dtype.itemsize
    cost = pl.CostEstimate(
        flops=4 * Bp * Dp * Dp,                         # two (Bp,Dp)x(Dp,Dp) matmuls
        transcendentals=0,
        bytes_accessed=2 * Bp * Dp * itemsize           # x in + out
        + 2 * Dp * Dp * 2                               # bf16 weights
        + 2 * Dp * 4,                                   # f32 biases
    )

    out_p = pl.pallas_call(
        _residual_block_kernel,
        out_shape=jax.ShapeDtypeStruct((Bp, Dp), x.dtype),
        grid=grid,
        in_specs=[x_spec, w_spec, b_spec, w_spec, b_spec],
        out_specs=o_spec,
        compiler_params=pltpu.CompilerParams(
            dimension_semantics=("parallel",),
            vmem_limit_bytes=vmem_limit,
        ),
        cost_estimate=cost,
    )(x_p, w1_t, b1_p, w2_t, b2_p)

    return out_p[:B, :D] if padded else out_p


def _reference(x, w1, b1, w2, b2):
    h = x @ w1.T + b1
    h = jnp.where(h > 0, h, 0.01 * h)
    y = h @ w2.T + b2
    return x + y


if __name__ == "__main__":
    batch = 8
    input_dim = 32

    key = jax.random.PRNGKey(0)
    kx, kw1, kb1, kw2, kb2 = jax.random.split(key, 5)

    x = jax.random.normal(kx, (batch, input_dim), dtype=jnp.float32)
    # Deterministic synthetic parameters (shapes match nn.Linear(input_dim, input_dim)).
    scale = 1.0 / jnp.sqrt(input_dim)
    w1 = jax.random.uniform(kw1, (input_dim, input_dim), jnp.float32, -scale, scale)
    b1 = jax.random.uniform(kb1, (input_dim,), jnp.float32, -scale, scale)
    w2 = jax.random.uniform(kw2, (input_dim, input_dim), jnp.float32, -scale, scale)
    b2 = jax.random.uniform(kb2, (input_dim,), jnp.float32, -scale, scale)

    out = residual_block(x, w1, b1, w2, b2)
    jax.block_until_ready(out)

    ref = _reference(x, w1, b1, w2, b2)
    assert out.shape == (batch, input_dim)
    # bf16 MXU operands with f32 accumulation -> ~1e-2-level relative error.
    assert jnp.allclose(out, ref, atol=5e-2, rtol=5e-2), (
        float(jnp.max(jnp.abs(out - ref)))
    )

    print("KERNEL_OK")
</pallas_src>

<mosaic_0001>
module attributes {stable_mosaic.version = 11 : i64} {
  func.func @_residual_block_kernel(%arg0: i32, %arg1: memref<8x128xf32, #tpu.memory_space<vmem>>, %arg2: memref<128x128xbf16, #tpu.memory_space<vmem>>, %arg3: memref<1x128xf32, #tpu.memory_space<vmem>>, %arg4: memref<128x128xbf16, #tpu.memory_space<vmem>>, %arg5: memref<1x128xf32, #tpu.memory_space<vmem>>, %arg6: memref<8x128xf32, #tpu.memory_space<vmem>>) attributes {dimension_semantics = [#tpu.dimension_semantics<parallel>], iteration_bounds = array<i64: 1>, scalar_prefetch = 0 : i64, scratch_operands = 0 : i64, tpu.core_type = #tpu.core_type<tc>, window_params = [{transform_indices = @transform_0, window_bounds = array<i64: 8, 128>}, {pipeline_mode = #tpu.pipeline_mode<synchronous>, transform_indices = @transform_1, window_bounds = array<i64: 128, 128>}, {pipeline_mode = #tpu.pipeline_mode<synchronous>, transform_indices = @transform_2, window_bounds = array<i64: 1, 128>}, {pipeline_mode = #tpu.pipeline_mode<synchronous>, transform_indices = @transform_3, window_bounds = array<i64: 128, 128>}, {pipeline_mode = #tpu.pipeline_mode<synchronous>, transform_indices = @transform_4, window_bounds = array<i64: 1, 128>}, {transform_indices = @transform_5, window_bounds = array<i64: 8, 128>}]} {
    %c0 = arith.constant 0 : index
    %c0_0 = arith.constant 0 : index
    %0 = vector.load %arg1[%c0, %c0_0] : memref<8x128xf32, #tpu.memory_space<vmem>>, vector<8x128xf32>
    %1 = arith.truncf %0 : vector<8x128xf32> to vector<8x128xbf16>
    %c0_1 = arith.constant 0 : index
    %c0_2 = arith.constant 0 : index
    %2 = vector.load %arg2[%c0_1, %c0_2] : memref<128x128xbf16, #tpu.memory_space<vmem>>, vector<128x128xbf16>
    %cst = arith.constant dense<0.000000e+00> : vector<8x128xf32>
    %3 = tpu.matmul %1, %2, %cst {dimension_numbers = #tpu.dot_dimension_numbers<[1], [0], [0], [1], [0, 0, 1, 1], [], []>} : vector<8x128xbf16>, vector<128x128xbf16>, vector<8x128xf32> -> vector<8x128xf32>
    %c0_3 = arith.constant 0 : index
    %c0_4 = arith.constant 0 : index
    %4 = vector.load %arg3[%c0_3, %c0_4] : memref<1x128xf32, #tpu.memory_space<vmem>>, vector<1x128xf32>
    %5 = vector.broadcast %4 : vector<1x128xf32> to vector<8x128xf32>
    %6 = arith.addf %3, %5 : vector<8x128xf32>
    %cst_5 = arith.constant 0.000000e+00 : f32
    %7 = vector.broadcast %cst_5 : f32 to vector<8x128xf32>
    %8 = arith.cmpf ogt, %6, %7 : vector<8x128xf32>
    %cst_6 = arith.constant 0.00999999977 : f32
    %9 = vector.broadcast %cst_6 : f32 to vector<8x128xf32>
    %10 = arith.mulf %9, %6 : vector<8x128xf32>
    %11 = arith.select %8, %6, %10 : vector<8x128xi1>, vector<8x128xf32>
    %12 = arith.truncf %11 : vector<8x128xf32> to vector<8x128xbf16>
    %c0_7 = arith.constant 0 : index
    %c0_8 = arith.constant 0 : index
    %13 = vector.load %arg4[%c0_7, %c0_8] : memref<128x128xbf16, #tpu.memory_space<vmem>>, vector<128x128xbf16>
    %cst_9 = arith.constant dense<0.000000e+00> : vector<8x128xf32>
    %14 = tpu.matmul %12, %13, %cst_9 {dimension_numbers = #tpu.dot_dimension_numbers<[1], [0], [0], [1], [0, 0, 1, 1], [], []>} : vector<8x128xbf16>, vector<128x128xbf16>, vector<8x128xf32> -> vector<8x128xf32>
    %c0_10 = arith.constant 0 : index
    %c0_11 = arith.constant 0 : index
    %15 = vector.load %arg5[%c0_10, %c0_11] : memref<1x128xf32, #tpu.memory_space<vmem>>, vector<1x128xf32>
    %16 = vector.broadcast %15 : vector<1x128xf32> to vector<8x128xf32>
    %17 = arith.addf %14, %16 : vector<8x128xf32>
    %c0_12 = arith.constant 0 : index
    %c0_13 = arith.constant 0 : index
    %18 = vector.load %arg1[%c0_12, %c0_13] : memref<8x128xf32, #tpu.memory_space<vmem>>, vector<8x128xf32>
    %19 = arith.addf %18, %17 : vector<8x128xf32>
    %c0_14 = arith.constant 0 : index
    %c0_15 = arith.constant 0 : index
    %20 = vector.load %arg6[%c0_14, %c0_15] : memref<8x128xf32, #tpu.memory_space<vmem>>, vector<8x128xf32>
    tpu.vector_store %arg6[%c0_14, %c0_15], %19 {strides = array<i32>} : memref<8x128xf32, #tpu.memory_space<vmem>>, vector<8x128xf32>,
    return
  }
  func.func @transform_0(%arg0: i32) -> (i32, i32) {
    %c0_i32 = arith.constant 0 : i32
    %c0_i32_0 = arith.constant 0 : i32
    return %arg0, %c0_i32 : i32, i32
  }
  func.func @transform_1(%arg0: i32) -> (i32, i32) {
    %c0_i32 = arith.constant 0 : i32
    %c0_i32_0 = arith.constant 0 : i32
    %c0_i32_1 = arith.constant 0 : i32
    return %c0_i32, %c0_i32_0 : i32, i32
  }
  func.func @transform_2(%arg0: i32) -> (i32, i32) {
    %c0_i32 = arith.constant 0 : i32
    %c0_i32_0 = arith.constant 0 : i32
    %c0_i32_1 = arith.constant 0 : i32
    return %c0_i32, %c0_i32_0 : i32, i32
  }
  func.func @transform_3(%arg0: i32) -> (i32, i32) {
    %c0_i32 = arith.constant 0 : i32
    %c0_i32_0 = arith.constant 0 : i32
    %c0_i32_1 = arith.constant 0 : i32
    return %c0_i32, %c0_i32_0 : i32, i32
  }
  func.func @transform_4(%arg0: i32) -> (i32, i32) {
    %c0_i32 = arith.constant 0 : i32
    %c0_i32_0 = arith.constant 0 : i32
    %c0_i32_1 = arith.constant 0 : i32
    return %c0_i32, %c0_i32_0 : i32, i32
  }
  func.func @transform_5(%arg0: i32) -> (i32, i32) {
    %c0_i32 = arith.constant 0 : i32
    %c0_i32_0 = arith.constant 0 : i32
    return %arg0, %c0_i32 : i32, i32
  }
}

</mosaic_0001>

<llo_original>
// kernel: residual_block.1
$region0: #{residual_block.1}
  #allocation0 [shape = 'u32[]', space=smem, size = 0x4, offset = 0x4, fixed_abs, tag = 'smem constant byte address 0x4 - core index']
  #allocation1 [shape = 'u32[144,128]{1,0:T(1,128)}', space=vmem, size = 0x12000, scoped, tag = 'internal scratch']
  %s0 = inlined_call_operand.vmem [shape: f32[8,128], index: 0, kind: input, shape index: {}]
  %s1 = inlined_call_operand.vmem [shape: bf16[128,128], index: 1, kind: input, shape index: {}]
  %s2 = inlined_call_operand.vmem [shape: f32[1,128], index: 2, kind: input, shape index: {}]
  %s3 = inlined_call_operand.vmem [shape: bf16[128,128], index: 3, kind: input, shape index: {}]
  %s4 = inlined_call_operand.vmem [shape: f32[1,128], index: 4, kind: input, shape index: {}]
  %s5 = inlined_call_operand.hbm [shape: f32[8,128], index: 5, kind: output, shape index: {}]
  %s6 = sld [smem:[#allocation0]]
  $region30: #{residual_block.1} parent=0
    _
  %s8 = ssub.s32 1, %s6
  %s9 = scalar_select 0, %s8, %s6
  $region1: #{residual_block.1} parent=0
    #allocation2 [shape = 'u8[4096]{0}', space=vmem, size = 0x1000, scoped, tag = 'output window, operand 0, single buffered']
    #allocation3 [shape = 's32[1]{0}', space=sflag, size = 0x4, scoped, tag = 'scoped memory for residual_block.1']
    %10 = vsyncpa [#allocation3], 0
    // Predicated region
    $region2: #{residual_block.1} parent=1 // pred_check
      _
    $region3: #{residual_block.1} parent=1 // pred_check_branch
      %12 = sbr.rel (0) target = $region5
    $region4: #{residual_block.1} parent=1 // pred_region
      _
    $region5: #{residual_block.1} parent=1 // pred_fallthru
      _
    // Predicated region
    $region6: #{residual_block.1} parent=1 // pred_check
      _
    $region7: #{residual_block.1} parent=1 // pred_check_branch
      %14 = sbr.rel (0) target = $region9
    $region8: #{residual_block.1} parent=1 // pred_region
      _
    $region9: #{residual_block.1} parent=1 // pred_fallthru
      _
    // Predicated region
    $region10: #{residual_block.1} parent=1 // pred_check
      _
    $region11: #{residual_block.1} parent=1 // pred_check_branch
      %16 = sbr.rel (0) target = $region13
    $region12: #{residual_block.1} parent=1 // pred_region
      _
    $region13: #{residual_block.1} parent=1 // pred_fallthru
      _
    // Predicated region
    $region14: #{residual_block.1} parent=1 // pred_check
      _
    $region15: #{residual_block.1} parent=1 // pred_check_branch
      %18 = sbr.rel (0) target = $region17
    $region16: #{residual_block.1} parent=1 // pred_region
      _
    $region17: #{residual_block.1} parent=1 // pred_fallthru
      _
    // Predicated region
    $region18: #{residual_block.1} parent=1 // pred_check
      _
    $region19: #{residual_block.1} parent=1 // pred_check_branch
      %20 = sbr.rel (0) target = $region21
    $region20: #{residual_block.1} parent=1 // pred_region
      _
    $region21: #{residual_block.1} parent=1 // pred_fallthru
      _
    %v22 = vld [vmem:[%s0] sm:$0xff]
    %v23 = vpack.c.bf16 %v22, %v22
    %v24 = vld [vmem:[%s1] sm:$0xf]
    %v25 = vld [vmem:[%s1 + $0x4] sm:$0xf]
    %v26 = vld [vmem:[%s1 + $0x8] sm:$0xf]
    %v27 = vld [vmem:[%s1 + $0xc] sm:$0xf]
    %v28 = vld [vmem:[%s1 + $0x10] sm:$0xf]
    %v29 = vld [vmem:[%s1 + $0x14] sm:$0xf]
    %v30 = vld [vmem:[%s1 + $0x18] sm:$0xf]
    %v31 = vld [vmem:[%s1 + $0x1c] sm:$0xf]
    %v32 = vld [vmem:[%s1 + $0x20] sm:$0xf]
    %v33 = vld [vmem:[%s1 + $0x24] sm:$0xf]
    %v34 = vld [vmem:[%s1 + $0x28] sm:$0xf]
    %v35 = vld [vmem:[%s1 + $0x2c] sm:$0xf]
    %v36 = vld [vmem:[%s1 + $0x30] sm:$0xf]
    %v37 = vld [vmem:[%s1 + $0x34] sm:$0xf]
    %v38 = vld [vmem:[%s1 + $0x38] sm:$0xf]
    %v39 = vld [vmem:[%s1 + $0x3c] sm:$0xf]
    %v40 = vld [vmem:[%s2] sm:$0x1]
    %v42 = vlaneseq
    %v43 = vshrl.u32 %v42, 7
    %v44 = vsub.s32 0, %v43
    %v45 = vrot.slane %v40, %v44
    %v63 = vunpack.c.l.b16 %v24
    %v64 = vunpack.c.l.b16 %v25
    %v65 = vunpack.c.l.b16 %v26
    %v66 = vunpack.c.l.b16 %v27
    %v67 = vunpack.c.l.b16 %v28
    %v68 = vunpack.c.l.b16 %v29
    %v69 = vunpack.c.l.b16 %v30
    %v70 = vunpack.c.l.b16 %v31
    %v71 = vunpack.c.l.b16 %v32
    %v72 = vunpack.c.l.b16 %v33
    %v73 = vunpack.c.l.b16 %v34
    %v74 = vunpack.c.l.b16 %v35
    %v75 = vunpack.c.l.b16 %v36
    %v76 = vunpack.c.l.b16 %v37
    %v77 = vunpack.c.l.b16 %v38
    %v78 = vunpack.c.l.b16 %v39
    %v79 = vpack.c.b16 %v64, %v63
    %v80 = vpack.c.b16 %v66, %v65
    %v81 = vpack.c.b16 %v68, %v67
    %v82 = vpack.c.b16 %v70, %v69
    %v83 = vpack.c.b16 %v72, %v71
    %v84 = vpack.c.b16 %v74, %v73
    %v85 = vpack.c.b16 %v76, %v75
    %v86 = vpack.c.b16 %v78, %v77
    %95 = vmatprep.subr.bf16.mxu0 0
    %96 = vmatpush1.bf16.msra.mxu0 %v79
    %97 = vmatprep.subr.bf16.mxu0 0
    %98 = vmatpush1.bf16.msra.mxu0 %v80
    %99 = vmatprep.subr.bf16.mxu0 0
    %100 = vmatpush1.bf16.msra.mxu0 %v81
    %101 = vmatprep.subr.bf16.mxu0 0
    %102 = vmatpush1.bf16.msra.mxu0 %v82
    %103 = vmatprep.subr.bf16.mxu0 0
    %104 = vmatpush1.bf16.msra.mxu0 %v83
    %105 = vmatprep.subr.bf16.mxu0 0
    %106 = vmatpush1.bf16.msra.mxu0 %v84
    %107 = vmatprep.subr.bf16.mxu0 0
    %108 = vmatpush1.bf16.msra.mxu0 %v85
    %109 = vmatprep.subr.bf16.mxu0 0
    %110 = vmatpush1.bf16.msra.mxu0 %v86
    %111 = vmatprep.subr.bf16.mxu0 0
    %112 = vmatpush1.bf16.msra.mxu0 0
    %113 = vmatprep.subr.bf16.mxu0 0
    %114 = vmatpush1.bf16.msra.mxu0 0
    %115 = vmatprep.subr.bf16.mxu0 0
    %116 = vmatpush1.bf16.msra.mxu0 0
    %117 = vmatprep.subr.bf16.mxu0 0
    %118 = vmatpush1.bf16.msra.mxu0 0
    %119 = vmatprep.subr.bf16.mxu0 0
    %120 = vmatpush1.bf16.msra.mxu0 0
    %121 = vmatprep.subr.bf16.mxu0 0
    %122 = vmatpush1.bf16.msra.mxu0 0
    %123 = vmatprep.subr.bf16.mxu0 0
    %124 = vmatpush1.bf16.msra.mxu0 0
    %125 = vmatprep.subr.bf16.mxu0 0
    %126 = vmatpush1.bf16.msra.mxu0 0
    %127 = vmatprep.mubr.bf16.mxu0 0
    %128 = vmatmul.mubr.bf16.gmra.mrb[0].mxu0 %v23
    %v129 = vpop.f32.mrb[0].mxu0
    %v130 = vadd.f32 %v45, %v129
    %v131 = vpop.f32.mrb[0].mxu0
    %v132 = vpop.f32.mrb[0].mxu0
    %v133 = vpop.f32.mrb[0].mxu0
    %134 = vdwg.mxu0
    %vm135 = vcmp.gt.f32.partialorder %v130, 0.0
    %v136 = vmul.f32 %v130, 0.01
    %v137 = vsel %vm135, %v130, %v136
    %v138 = vpack.c.bf16 %v137, %v137
    %v139 = vld [vmem:[%s3] sm:$0xf]
    %v140 = vld [vmem:[%s3 + $0x4] sm:$0xf]
    %v141 = vld [vmem:[%s3 + $0x8] sm:$0xf]
    %v142 = vld [vmem:[%s3 + $0xc] sm:$0xf]
    %v143 = vld [vmem:[%s3 + $0x10] sm:$0xf]
    %v144 = vld [vmem:[%s3 + $0x14] sm:$0xf]
    %v145 = vld [vmem:[%s3 + $0x18] sm:$0xf]
    %v146 = vld [vmem:[%s3 + $0x1c] sm:$0xf]
    %v147 = vld [vmem:[%s3 + $0x20] sm:$0xf]
    %v148 = vld [vmem:[%s3 + $0x24] sm:$0xf]
    %v149 = vld [vmem:[%s3 + $0x28] sm:$0xf]
    %v150 = vld [vmem:[%s3 + $0x2c] sm:$0xf]
    %v151 = vld [vmem:[%s3 + $0x30] sm:$0xf]
    %v152 = vld [vmem:[%s3 + $0x34] sm:$0xf]
    %v153 = vld [vmem:[%s3 + $0x38] sm:$0xf]
    %v154 = vld [vmem:[%s3 + $0x3c] sm:$0xf]
    %v155 = vld [vmem:[%s4] sm:$0x1]
    %v157 = vlaneseq
    %v158 = vshrl.u32 %v157, 7
    %v159 = vsub.s32 0, %v158
    %v160 = vrot.slane %v155, %v159
    %v178 = vunpack.c.l.b16 %v139
    %v179 = vunpack.c.l.b16 %v140
    %v180 = vunpack.c.l.b16 %v141
    %v181 = vunpack.c.l.b16 %v142
    %v182 = vunpack.c.l.b16 %v143
    %v183 = vunpack.c.l.b16 %v144
    %v184 = vunpack.c.l.b16 %v145
    %v185 = vunpack.c.l.b16 %v146
    %v186 = vunpack.c.l.b16 %v147
    %v187 = vunpack.c.l.b16 %v148
    %v188 = vunpack.c.l.b16 %v149
    %v189 = vunpack.c.l.b16 %v150
    %v190 = vunpack.c.l.b16 %v151
    %v191 = vunpack.c.l.b16 %v152
    %v192 = vunpack.c.l.b16 %v153
    %v193 = vunpack.c.l.b16 %v154
    %v194 = vpack.c.b16 %v179, %v178
    %v195 = vpack.c.b16 %v181, %v180
    %v196 = vpack.c.b16 %v183, %v182
    %v197 = vpack.c.b16 %v185, %v184
    %v198 = vpack.c.b16 %v187, %v186
    %v199 = vpack.c.b16 %v189, %v188
    %v200 = vpack.c.b16 %v191, %v190
    %v201 = vpack.c.b16 %v193, %v192
    %210 = vmatprep.subr.bf16.mxu0 0
    %211 = vmatpush1.bf16.msra.mxu0 %v194
    %212 = vmatprep.subr.bf16.mxu0 0
    %213 = vmatpush1.bf16.msra.mxu0 %v195
    %214 = vmatprep.subr.bf16.mxu0 0
    %215 = vmatpush1.bf16.msra.mxu0 %v196
    %216 = vmatprep.subr.bf16.mxu0 0
    %217 = vmatpush1.bf16.msra.mxu0 %v197
    %218 = vmatprep.subr.bf16.mxu0 0
    %219 = vmatpush1.bf16.msra.mxu0 %v198
    %220 = vmatprep.subr.bf16.mxu0 0
    %221 = vmatpush1.bf16.msra.mxu0 %v199
    %222 = vmatprep.subr.bf16.mxu0 0
    %223 = vmatpush1.bf16.msra.mxu0 %v200
    %224 = vmatprep.subr.bf16.mxu0 0
    %225 = vmatpush1.bf16.msra.mxu0 %v201
    %226 = vmatprep.subr.bf16.mxu0 0
    %227 = vmatpush1.bf16.msra.mxu0 0
    %228 = vmatprep.subr.bf16.mxu0 0
    %229 = vmatpush1.bf16.msra.mxu0 0
    %230 = vmatprep.subr.bf16.mxu0 0
    %231 = vmatpush1.bf16.msra.mxu0 0
    %232 = vmatprep.subr.bf16.mxu0 0
    %233 = vmatpush1.bf16.msra.mxu0 0
    %234 = vmatprep.subr.bf16.mxu0 0
    %235 = vmatpush1.bf16.msra.mxu0 0
    %236 = vmatprep.subr.bf16.mxu0 0
    %237 = vmatpush1.bf16.msra.mxu0 0
    %238 = vmatprep.subr.bf16.mxu0 0
    %239 = vmatpush1.bf16.msra.mxu0 0
    %240 = vmatprep.subr.bf16.mxu0 0
    %241 = vmatpush1.bf16.msra.mxu0 0
    %242 = vmatprep.mubr.bf16.mxu0 0
    %243 = vmatmul.mubr.bf16.gmra.mrb[0].mxu0 %v138
    %v244 = vpop.f32.mrb[0].mxu0
    %v245 = vadd.f32 %v160, %v244
    %v246 = vpop.f32.mrb[0].mxu0
    %v247 = vpop.f32.mrb[0].mxu0
    %v248 = vpop.f32.mrb[0].mxu0
    %249 = vdwg.mxu0
    %v250 = vadd.f32 %v22, %v245
    %251 = vst [vmem:[#allocation2] sm:$0xff] %v250
    // Predicated region
    $region22: #{residual_block.1} parent=1 // pred_check
      _
    $region23: #{residual_block.1} parent=1 // pred_check_branch
      %253 = sbr.rel (0) target = $region25
    $region24: #{residual_block.1} parent=1 // pred_region
      %s255 = ssub.s32 128, 128
      %256 = vsyncadd [#allocation3], %s255
      %s258 = sshll.u32 [#allocation2], 4
      %s259 = int_to_ptr.vmem [resolvable:$true] %s258
      %261 = dma.vmem_to_hbm [thread:$0]  %s259, 128, %s5, [#allocation3]
    $region25: #{residual_block.1} parent=1 // pred_fallthru
      _
    // Predicated region
    $region26: #{residual_block.1} parent=1 // pred_check
      _
    $region27: #{residual_block.1} parent=1 // pred_check_branch
      %263 = sbr.rel (0) target = $region29
    $region28: #{residual_block.1} parent=1 // pred_region
      %264 = dma.done [#allocation3], 128
    $region29: #{residual_block.1} parent=1 // pred_fallthru
      _
    %265 = vsyncpa [#allocation3], 1

</llo_original>
